<compile_context>
chip_gen: v5e
topology: v5e:2x2
jax: 0.10.0
libtpu: 0.0.40
codegen_flags: <defaults>
</compile_context>

<pallas_src>
import functools

import jax
import jax.numpy as jnp
from jax import lax
from jax.experimental import pallas as pl
from jax.experimental.pallas import tpu as pltpu


# ---------------------------------------------------------------------------
# Fused kernel: weighted softmax cross-entropy over one (C, TN) class-major tile
# ---------------------------------------------------------------------------
def _wce_kernel(logits_ref, target_ref, weights_ref, out_ref, *, one_hot):
    # logits_ref / target_ref : (C, TN) VMEM tiles (classes on sublanes,
    #                            anchors on lanes -> dense vregs)
    # weights_ref / out_ref   : (1, TN) lane-dense VMEM tiles
    logits = logits_ref[...].astype(jnp.float32)            # (C, TN)
    tgt = target_ref[...].astype(jnp.float32)                # (C, TN)
    w = weights_ref[...].astype(jnp.float32)                 # (1, TN)

    # Numerically-stable logsumexp over the class (sublane) axis.
    cmax = jnp.max(logits, axis=0, keepdims=True)            # (1, TN)
    lse = cmax + jnp.log(
        jnp.sum(jnp.exp(logits - cmax), axis=0, keepdims=True))  # (1, TN)

    if one_hot:
        # Exact for hard one-hot targets: picks logits[argmax(target)].
        picked = jnp.sum(tgt * logits, axis=0, keepdims=True)     # (1, TN)
    else:
        # First-maximal-index argmax + pick (for soft / tied targets).
        num_classes = logits.shape[0]
        row = lax.broadcasted_iota(jnp.int32, logits.shape, 0)    # (C, TN)
        tmax = jnp.max(tgt, axis=0, keepdims=True)                # (1, TN)
        arg = jnp.min(jnp.where(tgt == tmax, row, jnp.int32(num_classes)),
                      axis=0, keepdims=True)                      # (1, TN)
        picked = jnp.sum(jnp.where(row == arg, logits, 0.0),
                         axis=0, keepdims=True)                   # (1, TN)

    out_ref[...] = ((lse - picked) * w).astype(out_ref.dtype)


# ---------------------------------------------------------------------------
# Wrapper
# ---------------------------------------------------------------------------
def weighted_cross_entropy_loss(logits, target, weights, *,
                                anchor_tile=32768, one_hot_targets=True):
    """logits/target: (B, A, C); weights: (B, A) -> per-anchor loss (B, A)."""
    B, A, C = logits.shape
    N = B * A

    # Class-major, lane-dense presentation: (B, A, C) -> (C, B*A).
    # The transpose is a single XLA pass over HBM; it buys dense vregs, dense
    # VMEM tiles and lane-dense stores inside the kernel.
    logits_t = jnp.transpose(logits.reshape(N, C))   # (C, N)
    target_t = jnp.transpose(target.reshape(N, C))   # (C, N)
    w2 = weights.reshape(1, N)                        # free row-major reshape

    # Lane tile: full extent if small, else a multiple of 128 sized for
    # ~0.75-1.5 MiB of useful payload per input per step.
    if N <= anchor_tile:
        TN = N                                   # equals full dim -> legal
    else:
        TN = max(128, (anchor_tile // 128) * 128)

    grid = (pl.cdiv(N, TN),)
    kernel = functools.partial(_wce_kernel, one_hot=bool(one_hot_targets))

    out = pl.pallas_call(
        kernel,
        out_shape=jax.ShapeDtypeStruct((1, N), jnp.float32),
        grid_spec=pltpu.PrefetchScalarGridSpec(
            num_scalar_prefetch=0,
            grid=grid,
            in_specs=[
                pl.BlockSpec((C, TN), lambda i: (0, i)),
                pl.BlockSpec((C, TN), lambda i: (0, i)),
                pl.BlockSpec((1, TN), lambda i: (0, i)),
            ],
            out_specs=pl.BlockSpec((1, TN), lambda i: (0, i)),
        ),
        compiler_params=pltpu.CompilerParams(
            dimension_semantics=("parallel",)),
    )(logits_t, target_t, w2)

    return out.reshape(B, A)


class WeightedCrossEntropyLoss:
    """Pallas-TPU equivalent of pcdet's WeightedCrossEntropyLoss (no params)."""

    def __call__(self, input, target, weights):
        return weighted_cross_entropy_loss(input, target, weights)


# ---------------------------------------------------------------------------
# Demo / self-check
# ---------------------------------------------------------------------------
if __name__ == "__main__":
    B, A, C = 2, 256, 3   # (batch, #anchors, #classes)

    key = jax.random.PRNGKey(0)
    k1, k2, k3 = jax.random.split(key, 3)
    logits = jax.random.normal(k1, (B, A, C), dtype=jnp.float32)
    cls = jax.random.randint(k2, (B, A), 0, C, dtype=jnp.int32)
    target = jax.nn.one_hot(cls, C, dtype=jnp.float32)
    weights = jax.random.uniform(k3, (B, A), dtype=jnp.float32)

    loss = WeightedCrossEntropyLoss()(logits, target, weights)
    loss = jax.block_until_ready(loss)

    # Also exercise the argmax (non-one-hot) path once.
    loss_argmax = weighted_cross_entropy_loss(
        logits, target, weights, one_hot_targets=False)
    loss_argmax = jax.block_until_ready(loss_argmax)

    # pure-JAX reference of the PyTorch semantics
    lse = jax.scipy.special.logsumexp(logits, axis=-1)
    idx = jnp.argmax(target, axis=-1)
    picked = jnp.take_along_axis(logits, idx[..., None], axis=-1)[..., 0]
    ref = (lse - picked) * weights

    assert loss.shape == (B, A)
    assert jnp.allclose(loss, ref, atol=1e-5, rtol=1e-5), (loss, ref)
    assert jnp.allclose(loss_argmax, ref, atol=1e-5, rtol=1e-5), (loss_argmax, ref)
    print("KERNEL_OK")
</pallas_src>

<mosaic_0001>
module attributes {stable_mosaic.version = 11 : i64} {
  func.func @_wce_kernel(%arg0: i32, %arg1: memref<3x512xf32, #tpu.memory_space<vmem>>, %arg2: memref<3x512xf32, #tpu.memory_space<vmem>>, %arg3: memref<1x512xf32, #tpu.memory_space<vmem>>, %arg4: memref<1x512xf32, #tpu.memory_space<vmem>>) attributes {dimension_semantics = [#tpu.dimension_semantics<parallel>], iteration_bounds = array<i64: 1>, scalar_prefetch = 0 : i64, scratch_operands = 0 : i64, tpu.core_type = #tpu.core_type<tc>, window_params = [{transform_indices = @transform_0, window_bounds = array<i64: 3, 512>}, {transform_indices = @transform_1, window_bounds = array<i64: 3, 512>}, {transform_indices = @transform_2, window_bounds = array<i64: 1, 512>}, {transform_indices = @transform_3, window_bounds = array<i64: 1, 512>}]} {
    %c0 = arith.constant 0 : index
    %c0_0 = arith.constant 0 : index
    %0 = vector.load %arg1[%c0, %c0_0] : memref<3x512xf32, #tpu.memory_space<vmem>>, vector<3x512xf32>
    %c0_1 = arith.constant 0 : index
    %c0_2 = arith.constant 0 : index
    %1 = vector.load %arg2[%c0_1, %c0_2] : memref<3x512xf32, #tpu.memory_space<vmem>>, vector<3x512xf32>
    %c0_3 = arith.constant 0 : index
    %c0_4 = arith.constant 0 : index
    %2 = vector.load %arg3[%c0_3, %c0_4] : memref<1x512xf32, #tpu.memory_space<vmem>>, vector<1x512xf32>
    %cst = arith.constant dense<0xFF800000> : vector<512xf32>
    %3 = vector.multi_reduction <maximumf>, %0, %cst [0] : vector<3x512xf32> to vector<512xf32>
    %4 = vector.shape_cast %3 : vector<512xf32> to vector<1x512xf32>
    %5 = vector.broadcast %4 : vector<1x512xf32> to vector<3x512xf32>
    %6 = arith.subf %0, %5 : vector<3x512xf32>
    %7 = math.exp %6 : vector<3x512xf32>
    %cst_5 = arith.constant dense<0.000000e+00> : vector<512xf32>
    %8 = vector.multi_reduction <add>, %7, %cst_5 [0] : vector<3x512xf32> to vector<512xf32>
    %9 = vector.shape_cast %8 : vector<512xf32> to vector<1x512xf32>
    %10 = math.log %9 : vector<1x512xf32>
    %11 = arith.addf %4, %10 : vector<1x512xf32>
    %12 = arith.mulf %1, %0 : vector<3x512xf32>
    %cst_6 = arith.constant dense<0.000000e+00> : vector<512xf32>
    %13 = vector.multi_reduction <add>, %12, %cst_6 [0] : vector<3x512xf32> to vector<512xf32>
    %14 = vector.shape_cast %13 : vector<512xf32> to vector<1x512xf32>
    %15 = arith.subf %11, %14 : vector<1x512xf32>
    %16 = arith.mulf %15, %2 : vector<1x512xf32>
    %c0_7 = arith.constant 0 : index
    %c0_8 = arith.constant 0 : index
    %17 = vector.load %arg4[%c0_7, %c0_8] : memref<1x512xf32, #tpu.memory_space<vmem>>, vector<1x512xf32>
    tpu.vector_store %arg4[%c0_7, %c0_8], %16 {strides = array<i32>} : memref<1x512xf32, #tpu.memory_space<vmem>>, vector<1x512xf32>,
    return
  }
  func.func @transform_0(%arg0: i32) -> (i32, i32) {
    %c0_i32 = arith.constant 0 : i32
    %c0_i32_0 = arith.constant 0 : i32
    return %c0_i32, %arg0 : i32, i32
  }
  func.func @transform_1(%arg0: i32) -> (i32, i32) {
    %c0_i32 = arith.constant 0 : i32
    %c0_i32_0 = arith.constant 0 : i32
    return %c0_i32, %arg0 : i32, i32
  }
  func.func @transform_2(%arg0: i32) -> (i32, i32) {
    %c0_i32 = arith.constant 0 : i32
    %c0_i32_0 = arith.constant 0 : i32
    return %c0_i32, %arg0 : i32, i32
  }
  func.func @transform_3(%arg0: i32) -> (i32, i32) {
    %c0_i32 = arith.constant 0 : i32
    %c0_i32_0 = arith.constant 0 : i32
    return %c0_i32, %arg0 : i32, i32
  }
}

</mosaic_0001>

<llo_original>
// kernel: tpu_custom_call.1
$region0: #{tpu_custom_call.1}
  #allocation0 [shape = 'u32[]', space=smem, size = 0x4, offset = 0x4, fixed_abs, tag = 'smem constant byte address 0x4 - core index']
  #allocation1 [shape = 'u32[72,128]{1,0:T(1,128)}', space=vmem, size = 0x9000, scoped, tag = 'internal scratch']
  %s0 = inlined_call_operand.hbm [shape: f32[3,512], index: 0, kind: input, shape index: {}]
  %s1 = inlined_call_operand.hbm [shape: f32[3,512], index: 1, kind: input, shape index: {}]
  %s2 = inlined_call_operand.hbm [shape: f32[1,512], index: 2, kind: input, shape index: {}]
  %s3 = inlined_call_operand.hbm [shape: f32[1,512], index: 3, kind: output, shape index: {}]
  %s4 = sld [smem:[#allocation0]]
  $region34: #{tpu_custom_call.1} parent=0
    _
  %s6 = ssub.s32 1, %s4
  %s7 = scalar_select 0, %s6, %s4
  $region1: #{tpu_custom_call.1} parent=0
    #allocation2 [shape = 'u8[8192]{0}', space=vmem, size = 0x2000, scoped, tag = 'input window, operand 0, single buffered']
    #allocation3 [shape = 's32[1]{0}', space=sflag, size = 0x4, scoped, tag = 'scoped memory for tpu_custom_call.1']
    #allocation4 [shape = 's32[1]{0}', space=sflag, size = 0x4, scoped, tag = 'scoped memory for tpu_custom_call.1']
    #allocation5 [shape = 'u8[8192]{0}', space=vmem, size = 0x2000, scoped, tag = 'input window, operand 1, single buffered']
    #allocation6 [shape = 's32[1]{0}', space=sflag, size = 0x4, scoped, tag = 'scoped memory for tpu_custom_call.1']
    #allocation7 [shape = 'u8[2048]{0}', space=vmem, size = 0x800, scoped, tag = 'input window, operand 2, single buffered']
    #allocation8 [shape = 'u8[2048]{0}', space=vmem, size = 0x800, scoped, tag = 'output window, operand 0, single buffered']
    %8 = vsyncpa [#allocation3], 0
    %9 = vsyncpa [#allocation6], 0
    %10 = vsyncpa [#allocation4], 0
    // Predicated region
    $region2: #{tpu_custom_call.1} parent=1 // pred_check
      _
    $region3: #{tpu_custom_call.1} parent=1 // pred_check_branch
      %12 = sbr.rel (0) target = $region5
    $region4: #{tpu_custom_call.1} parent=1 // pred_region
      %14 = vsyncadd [#allocation3], 0
      %s16 = sshll.u32 %s0, 4
      %s17 = int_to_ptr.hbm [resolvable:$true] %s16
      %s18 = sshll.u32 [#allocation2], 4
      %s19 = int_to_ptr.vmem [resolvable:$true] %s18
      %21 = dma.hbm_to_vmem [thread:$0]  %s17, 256, %s19, [#allocation3]
    $region5: #{tpu_custom_call.1} parent=1 // pred_fallthru
      _
    // Predicated region
    $region6: #{tpu_custom_call.1} parent=1 // pred_check
      _
    $region7: #{tpu_custom_call.1} parent=1 // pred_check_branch
      %23 = sbr.rel (0) target = $region9
    $region8: #{tpu_custom_call.1} parent=1 // pred_region
      %25 = vsyncadd [#allocation6], 0
      %s27 = sshll.u32 %s1, 4
      %s28 = int_to_ptr.hbm [resolvable:$true] %s27
      %s29 = sshll.u32 [#allocation5], 4
      %s30 = int_to_ptr.vmem [resolvable:$true] %s29
      %32 = dma.hbm_to_vmem [thread:$0]  %s28, 256, %s30, [#allocation6]
    $region9: #{tpu_custom_call.1} parent=1 // pred_fallthru
      _
    // Predicated region
    $region10: #{tpu_custom_call.1} parent=1 // pred_check
      _
    $region11: #{tpu_custom_call.1} parent=1 // pred_check_branch
      %34 = sbr.rel (0) target = $region13
    $region12: #{tpu_custom_call.1} parent=1 // pred_region
      %36 = vsyncadd [#allocation6], 0
      %s38 = sshll.u32 %s2, 4
      %s39 = int_to_ptr.hbm [resolvable:$true] %s38
      %s40 = sshll.u32 [#allocation7], 4
      %s41 = int_to_ptr.vmem [resolvable:$true] %s40
      %43 = dma.hbm_to_vmem [thread:$0]  %s39, 64, %s41, [#allocation6]
    $region13: #{tpu_custom_call.1} parent=1 // pred_fallthru
      _
    // Predicated region
    $region14: #{tpu_custom_call.1} parent=1 // pred_check
      _
    $region15: #{tpu_custom_call.1} parent=1 // pred_check_branch
      %45 = sbr.rel (0) target = $region17
    $region16: #{tpu_custom_call.1} parent=1 // pred_region
      %47 = dma.done [#allocation3], 256
    $region17: #{tpu_custom_call.1} parent=1 // pred_fallthru
      _
    // Predicated region
    $region18: #{tpu_custom_call.1} parent=1 // pred_check
      _
    $region19: #{tpu_custom_call.1} parent=1 // pred_check_branch
      %49 = sbr.rel (0) target = $region21
    $region20: #{tpu_custom_call.1} parent=1 // pred_region
      %51 = dma.done [#allocation6], 256
    $region21: #{tpu_custom_call.1} parent=1 // pred_fallthru
      _
    // Predicated region
    $region22: #{tpu_custom_call.1} parent=1 // pred_check
      _
    $region23: #{tpu_custom_call.1} parent=1 // pred_check_branch
      %53 = sbr.rel (0) target = $region25
    $region24: #{tpu_custom_call.1} parent=1 // pred_region
      %55 = dma.done [#allocation6], 64
    $region25: #{tpu_custom_call.1} parent=1 // pred_fallthru
      _
    %v56 = vld [vmem:[#allocation2] sm:$0x77]
    %v57 = vld [vmem:[#allocation2 + $0x8] sm:$0x77]
    %v58 = vld [vmem:[#allocation5] sm:$0x77]
    %v59 = vld [vmem:[#allocation5 + $0x8] sm:$0x77]
    %v60 = vld [vmem:[#allocation7] sm:$0xf]
    %63 = vst [vmem:[#allocation1] ss:$2 sm:$0xff] %v56
    %s64 = scalar_lea.vmem [#allocation1], 16
    %65 = vst [vmem:[%s64] ss:$2 sm:$0xff] %v57
    %v66 = vld.sshfl [vmem:[#allocation1] sm:$0xff pattern:$0x75316420]
    %v67 = vld.sshfl [vmem:[#allocation1 + $0x8] sm:$0xff pattern:$0x75316420]
    %v68 = vld.sshfl [vmem:[#allocation1 + $0x10] sm:$0xff pattern:$0x75316420]
    %v69 = vld.sshfl [vmem:[#allocation1 + $0x18] sm:$0xff pattern:$0x75316420]
    %vm74 = vcmask 1042432
    %v75 = vsel %vm74, %v66, -inf
    %v76 = vrot.slane %v75, 4
    %v77 = vmax.f32 %v75, %v76
    %v78 = vrot.slane %v77, 2
    %v79 = vmax.f32 %v77, %v78
    %v80 = vrot.slane %v79, 1
    %v81 = vmax.f32 %v79, %v80
    %v82 = vsel %vm74, %v67, -inf
    %v83 = vrot.slane %v82, 4
    %v84 = vmax.f32 %v82, %v83
    %v85 = vrot.slane %v84, 2
    %v86 = vmax.f32 %v84, %v85
    %v87 = vrot.slane %v86, 1
    %v88 = vmax.f32 %v86, %v87
    %v89 = vsel %vm74, %v68, -inf
    %v90 = vrot.slane %v89, 4
    %v91 = vmax.f32 %v89, %v90
    %v92 = vrot.slane %v91, 2
    %v93 = vmax.f32 %v91, %v92
    %v94 = vrot.slane %v93, 1
    %v95 = vmax.f32 %v93, %v94
    %v96 = vsel %vm74, %v69, -inf
    %v97 = vrot.slane %v96, 4
    %v98 = vmax.f32 %v96, %v97
    %v99 = vrot.slane %v98, 2
    %v100 = vmax.f32 %v98, %v99
    %v101 = vrot.slane %v100, 1
    %v102 = vmax.f32 %v100, %v101
    %v107 = vrot.slane %v88, 4
    %v108 = vrot.slane %v102, 4
    %vm109 = vcmask 1043456
    %v110 = vsel %vm109, %v81, %v107
    %v111 = vsel %vm109, %v95, %v108
    %v114 = vsub.f32 %v56, %v110
    %v115 = vsub.f32 %v57, %v111
    %v116 = vmul.f32 %v114, 1.442695
    %v117 = vpow.pop %v116
    %v118 = vmul.f32 %v115, 1.442695
    %v119 = vpow.pop %v118
    %122 = vst [vmem:[#allocation1] ss:$2 sm:$0xff] %v117
    %s123 = scalar_lea.vmem [#allocation1], 16
    %124 = vst [vmem:[%s123] ss:$2 sm:$0xff] %v119
    %v125 = vld.sshfl [vmem:[#allocation1] sm:$0xff pattern:$0x75316420]
    %v126 = vld.sshfl [vmem:[#allocation1 + $0x8] sm:$0xff pattern:$0x75316420]
    %v127 = vld.sshfl [vmem:[#allocation1 + $0x10] sm:$0xff pattern:$0x75316420]
    %v128 = vld.sshfl [vmem:[#allocation1 + $0x18] sm:$0xff pattern:$0x75316420]
    %v133 = vsel %vm74, %v125, 0.0
    %v134 = vrot.slane %v133, 4
    %v135 = vadd.f32 %v133, %v134
    %v136 = vrot.slane %v135, 2
    %v137 = vadd.f32 %v135, %v136
    %v138 = vrot.slane %v137, 1
    %v139 = vadd.f32 %v137, %v138
    %v140 = vsel %vm74, %v126, 0.0
    %v141 = vrot.slane %v140, 4
    %v142 = vadd.f32 %v140, %v141
    %v143 = vrot.slane %v142, 2
    %v144 = vadd.f32 %v142, %v143
    %v145 = vrot.slane %v144, 1
    %v146 = vadd.f32 %v144, %v145
    %v147 = vsel %vm74, %v127, 0.0
    %v148 = vrot.slane %v147, 4
    %v149 = vadd.f32 %v147, %v148
    %v150 = vrot.slane %v149, 2
    %v151 = vadd.f32 %v149, %v150
    %v152 = vrot.slane %v151, 1
    %v153 = vadd.f32 %v151, %v152
    %v154 = vsel %vm74, %v128, 0.0
    %v155 = vrot.slane %v154, 4
    %v156 = vadd.f32 %v154, %v155
    %v157 = vrot.slane %v156, 2
    %v158 = vadd.f32 %v156, %v157
    %v159 = vrot.slane %v158, 1
    %v160 = vadd.f32 %v158, %v159
    %v161 = vlog2.pop %v139
    %v162 = vmul.f32 %v161, 0.6931472
    %v163 = vlog2.pop %v146
    %v164 = vmul.f32 %v163, 0.6931472
    %v165 = vlog2.pop %v153
    %v166 = vmul.f32 %v165, 0.6931472
    %v167 = vlog2.pop %v160
    %v168 = vmul.f32 %v167, 0.6931472
    %v169 = vadd.f32 %v81, %v162
    %v170 = vadd.f32 %v88, %v164
    %v171 = vadd.f32 %v95, %v166
    %v172 = vadd.f32 %v102, %v168
    %v173 = vmul.f32 %v58, %v56
    %v174 = vmul.f32 %v59, %v57
    %177 = vst [vmem:[#allocation1] ss:$2 sm:$0xff] %v173
    %s178 = scalar_lea.vmem [#allocation1], 16
    %179 = vst [vmem:[%s178] ss:$2 sm:$0xff] %v174
    %v180 = vld.sshfl [vmem:[#allocation1] sm:$0xff pattern:$0x75316420]
    %v181 = vld.sshfl [vmem:[#allocation1 + $0x8] sm:$0xff pattern:$0x75316420]
    %v182 = vld.sshfl [vmem:[#allocation1 + $0x10] sm:$0xff pattern:$0x75316420]
    %v183 = vld.sshfl [vmem:[#allocation1 + $0x18] sm:$0xff pattern:$0x75316420]
    %v188 = vsel %vm74, %v180, 0.0
    %v189 = vrot.slane %v188, 4
    %v190 = vadd.f32 %v188, %v189
    %v191 = vrot.slane %v190, 2
    %v192 = vadd.f32 %v190, %v191
    %v193 = vrot.slane %v192, 1
    %v194 = vadd.f32 %v192, %v193
    %v195 = vsel %vm74, %v181, 0.0
    %v196 = vrot.slane %v195, 4
    %v197 = vadd.f32 %v195, %v196
    %v198 = vrot.slane %v197, 2
    %v199 = vadd.f32 %v197, %v198
    %v200 = vrot.slane %v199, 1
    %v201 = vadd.f32 %v199, %v200
    %v202 = vsel %vm74, %v182, 0.0
    %v203 = vrot.slane %v202, 4
    %v204 = vadd.f32 %v202, %v203
    %v205 = vrot.slane %v204, 2
    %v206 = vadd.f32 %v204, %v205
    %v207 = vrot.slane %v206, 1
    %v208 = vadd.f32 %v206, %v207
    %v209 = vsel %vm74, %v183, 0.0
    %v210 = vrot.slane %v209, 4
    %v211 = vadd.f32 %v209, %v210
    %v212 = vrot.slane %v211, 2
    %v213 = vadd.f32 %v211, %v212
    %v214 = vrot.slane %v213, 1
    %v215 = vadd.f32 %v213, %v214
    %v216 = vsub.f32 %v169, %v194
    %v217 = vsub.f32 %v170, %v201
    %v218 = vsub.f32 %v171, %v208
    %v219 = vsub.f32 %v172, %v215
    %v221 = vperm.slane %v60, 0
    %v222 = vperm.slane %v60, 1
    %v223 = vperm.slane %v60, 2
    %v224 = vperm.slane %v60, 3
    %v229 = vmul.f32 %v216, %v221
    %v230 = vmul.f32 %v217, %v222
    %v231 = vmul.f32 %v218, %v223
    %v232 = vmul.f32 %v219, %v224
    %v237 = vrot.slane %v230, 7
    %v238 = vrot.slane %v231, 6
    %v239 = vrot.slane %v232, 5
    %vm240 = vcmask 1040384
    %v241 = vsel %vm240, %v229, %v237
    %vm242 = vcmask 1042434
    %v243 = vsel %vm242, %v238, %v239
    %vm244 = vcmask 1041408
    %v245 = vsel %vm244, %v241, %v243
    %v247 = vlaneseq
    %vm248 = vcmp.ge.s32.totalorder %v247, 0
    %vm249 = vcmp.lt.s32.totalorder %v247, 512
    %vm250 = vmand %vm248, %vm249
    %251 = vst.msk [vmem:[#allocation8] sm:$0xf] %vm250, %v245
    // Predicated region
    $region26: #{tpu_custom_call.1} parent=1 // pred_check
      _
    $region27: #{tpu_custom_call.1} parent=1 // pred_check_branch
      %253 = sbr.rel (0) target = $region29
    $region28: #{tpu_custom_call.1} parent=1 // pred_region
      %255 = vsyncadd [#allocation4], 0
      %s257 = sshll.u32 [#allocation8], 4
      %s258 = int_to_ptr.vmem [resolvable:$true] %s257
      %s259 = sshll.u32 %s3, 4
      %s260 = int_to_ptr.hbm [resolvable:$true] %s259
      %262 = dma.vmem_to_hbm [thread:$0]  %s258, 64, %s260, [#allocation4]
    $region29: #{tpu_custom_call.1} parent=1 // pred_fallthru
      _
    // Predicated region
    $region30: #{tpu_custom_call.1} parent=1 // pred_check
      _
    $region31: #{tpu_custom_call.1} parent=1 // pred_check_branch
      %264 = sbr.rel (0) target = $region33
    $region32: #{tpu_custom_call.1} parent=1 // pred_region
      %266 = dma.done [#allocation4], 64
    $region33: #{tpu_custom_call.1} parent=1 // pred_fallthru
      _
    %267 = vsyncpa [#allocation3], 1
    %268 = vsyncpa [#allocation6], 1
    %269 = vsyncpa [#allocation4], 1

</llo_original>
